<compile_context>
chip_gen: v7x
topology: tpu7x:2x2x1
jax: 0.10.0
libtpu: 0.0.40
codegen_flags: <defaults>
</compile_context>

<pallas_src>
import functools

import jax
import jax.numpy as jnp
from jax import lax
from jax.experimental import pallas as pl
from jax.experimental.pallas import tpu as pltpu


def _supcon_tile_kernel(a_ref, ct_ref, lbl_col_ref, lbl_row_ref, inv_cnt_ref,
                        out_ref, m_ref, l_ref, psum_ref,
                        *, num_valid_cols, has_col_padding):
    i = pl.program_id(0)            # anchor-row tile index ("parallel")
    j = pl.program_id(1)            # contrast-column tile index (reduction, last)
    nj = pl.num_programs(1)

    ta = a_ref.shape[0]
    tc = ct_ref.shape[1]

    @pl.when(j == 0)
    def _init():
        m_ref[...] = jnp.full(m_ref.shape, -jnp.inf, dtype=jnp.float32)
        l_ref[...] = jnp.zeros(l_ref.shape, dtype=jnp.float32)
        psum_ref[...] = jnp.zeros(psum_ref.shape, dtype=jnp.float32)

    # (ta, tc) similarity tile on the MXU.  Anchor rows are pre-normalized with
    # 1/T folded in; contrast features arrive K-major (Dp, tc) so this is a
    # plain [M,K]x[K,N] matmul with f32 accumulation and no in-kernel transpose.
    sim = jnp.dot(a_ref[...], ct_ref[...], preferred_element_type=jnp.float32)

    # Diagonal / padded-column masks from broadcast of (ta,1) vs (1,tc) iotas
    # (no full-size int32 temporaries).
    row_gid = i * ta + lax.broadcasted_iota(jnp.int32, (ta, 1), 0)
    col_gid = j * tc + lax.broadcasted_iota(jnp.int32, (1, tc), 1)
    not_diag = row_gid != col_gid                       # (ta, tc) via broadcast
    if has_col_padding:                                 # static Python branch
        col_ok = col_gid < num_valid_cols               # (1, tc)
        keep = jnp.logical_and(not_diag, col_ok)
        sim_for_max = jnp.where(col_ok, sim, -jnp.inf)  # keep m == true row max
    else:
        keep = not_diag
        sim_for_max = sim

    # Positives: same label, not self, not a padded column.
    pos = jnp.logical_and(lbl_col_ref[...] == lbl_row_ref[...], keep)

    # Online log-sum-exp over contrast tiles.  Row max matches torch.max over
    # all (real) columns incl. the diagonal; the denominator excludes the
    # diagonal, matching exp_logits * logits_mask.
    m_prev = m_ref[...]
    m_new = jnp.maximum(m_prev, jnp.max(sim_for_max, axis=1, keepdims=True))
    p = jnp.where(keep, jnp.exp(sim - m_new), 0.0)
    l_ref[...] = jnp.exp(m_prev - m_new) * l_ref[...] + jnp.sum(
        p, axis=1, keepdims=True)
    psum_ref[...] = psum_ref[...] + jnp.sum(
        jnp.where(pos, sim, 0.0), axis=1, keepdims=True)
    m_ref[...] = m_new

    @pl.when(j == nj - 1)
    def _finalize():
        # mean_log_prob_pos = pos_sum / pos_cnt - row_max - log(denom)
        # inv_cnt == inf for zero-positive anchors -> 0 * inf = NaN, matching
        # the PyTorch reference's 0/0.
        mean_lp = (psum_ref[...] * inv_cnt_ref[...]
                   - m_ref[...] - jnp.log(l_ref[...]))
        out_ref[...] = -mean_lp


def _round_up(x, m):
    return ((x + m - 1) // m) * m


def _pick_tiles(B, anchor_tile, contrast_tile):
    """Pick (ta, tc, Bp): tc multiple of 128, ta multiple of 8, both divide Bp."""
    tc = min(_round_up(contrast_tile, 128), _round_up(B, 128))
    Bp = _round_up(B, tc)
    ta = min(_round_up(anchor_tile, 8), Bp)
    while ta > 8 and Bp % ta:
        ta -= 8
    return ta, tc, Bp


def supcon_loss(features, labels, temperature=0.07, *,
                anchor_tile=512, contrast_tile=512,
                matmul_dtype=jnp.bfloat16):
    """SupConLoss forward.  features: (B, D) float, labels: (B,) int. -> f32 scalar.

    matmul_dtype=jnp.bfloat16 (default) streams bf16 features to the MXU with
    f32 accumulation; pass jnp.float32 for a bit-accurate (slower) path.
    """
    B, D = features.shape
    labels = jnp.reshape(labels, (-1,)).astype(jnp.int32)
    if labels.shape[0] != B:
        raise ValueError("Num of labels does not match num of features")

    inv_t = float(1.0 / temperature)

    # ---- O(B*D)/O(B) preprocessing hoisted out of the kernel (plain XLA) ----
    f32 = features.astype(jnp.float32)
    # F.normalize(p=2, dim=1, eps=1e-12)
    fn = f32 / jnp.maximum(jnp.linalg.norm(f32, axis=1, keepdims=True), 1e-12)
    # Per-anchor positive count (excluding self); 1/0 = inf -> NaN downstream.
    cnt = jnp.sum((labels[:, None] == labels[None, :]).astype(jnp.float32),
                  axis=1, keepdims=True) - 1.0
    inv_cnt = 1.0 / cnt                                             # (B, 1)

    # ---- padding & tiling ----------------------------------------------------
    Dp = _round_up(D, 128)                       # lane-dense feature dim
    ta, tc, Bp = _pick_tiles(B, anchor_tile, contrast_tile)

    fn_p = jnp.pad(fn, ((0, Bp - B), (0, Dp - D)))       # zero pad rows/cols
    anchor = (fn_p * inv_t).astype(matmul_dtype)         # (Bp, Dp), 1/T folded in
    contrast_t = fn_p.T.astype(matmul_dtype)             # (Dp, Bp), K-major
    lbl_pad = jnp.pad(labels, (0, Bp - B))
    lbl_col = lbl_pad.reshape(Bp, 1)
    lbl_row = lbl_pad.reshape(1, Bp)
    inv_cnt_p = jnp.pad(inv_cnt, ((0, Bp - B), (0, 0)))

    grid = (Bp // ta, Bp // tc)
    kernel = functools.partial(_supcon_tile_kernel,
                               num_valid_cols=B,
                               has_col_padding=(Bp != B))

    # TODO(synk): on v7x verify the "parallel" anchor axis shards across both
    # TensorCores (switch to pltpu.CORE_PARALLEL if xprof shows one idle TC);
    # on v5e consider pipeline_mode=pl.Buffered(3) on the contrast BlockSpec if
    # the per-step contrast DMA is exposed in the profile.
    neg_mean_log_prob = pl.pallas_call(
        kernel,
        out_shape=jax.ShapeDtypeStruct((Bp, 1), jnp.float32),
        grid_spec=pltpu.PrefetchScalarGridSpec(
            num_scalar_prefetch=0,
            grid=grid,
            in_specs=[
                pl.BlockSpec((ta, Dp), lambda i, j: (i, 0)),   # anchor rows (scaled)
                pl.BlockSpec((Dp, tc), lambda i, j: (0, j)),   # contrast, K-major
                pl.BlockSpec((ta, 1), lambda i, j: (i, 0)),    # anchor labels
                pl.BlockSpec((1, tc), lambda i, j: (0, j)),    # contrast labels
                pl.BlockSpec((ta, 1), lambda i, j: (i, 0)),    # 1 / positive-count
            ],
            out_specs=pl.BlockSpec((ta, 1), lambda i, j: (i, 0)),
            scratch_shapes=[pltpu.VMEM((ta, 1), jnp.float32)] * 3,  # m, l, psum
        ),
        compiler_params=pltpu.CompilerParams(
            dimension_semantics=("parallel", "arbitrary"),
            vmem_limit_bytes=48 * 1024 * 1024,   # fits v7x's 64 MiB physical VMEM
        ),
    )(anchor, contrast_t, lbl_col, lbl_row, inv_cnt_p)

    # Drop padded anchor rows; tiny final mean in plain JAX.
    return jnp.mean(neg_mean_log_prob[:B, 0])


def _reference_supcon(features, labels, temperature=0.07):
    """Pure-JAX reference mirroring the PyTorch forward."""
    f = features.astype(jnp.float32)
    B = f.shape[0]
    fn = f / jnp.maximum(jnp.linalg.norm(f, axis=1, keepdims=True), 1e-12)
    sim = (fn @ fn.T) / temperature
    logits = sim - jnp.max(sim, axis=1, keepdims=True)
    logits_mask = 1.0 - jnp.eye(B, dtype=jnp.float32)
    mask = (labels[:, None] == labels[None, :]).astype(jnp.float32) * logits_mask
    exp_logits = jnp.exp(logits) * logits_mask
    log_prob = logits - jnp.log(exp_logits.sum(1, keepdims=True))
    mean_log_prob_pos = (mask * log_prob).sum(1) / mask.sum(1)
    return jnp.mean(-mean_log_prob_pos)


if __name__ == "__main__":
    key = jax.random.PRNGKey(0)
    temperature = 0.07

    # --- small, tile-aligned-after-padding case ------------------------------
    B, D = 8, 32
    features = jax.random.normal(key, (B, D), dtype=jnp.float32)
    labels = jnp.array([0, 0, 1, 1, 0, 1, 0, 1], dtype=jnp.int32)  # all have positives
    ref = _reference_supcon(features, labels, temperature)

    # f32 MXU path: tight check against the f32 reference.
    loss_f32 = supcon_loss(features, labels, temperature,
                           matmul_dtype=jnp.float32)
    jax.block_until_ready(loss_f32)
    assert jnp.allclose(loss_f32, ref, rtol=1e-4, atol=1e-4), (loss_f32, ref)

    # default bf16 MXU path (f32 accumulation): documented precision tradeoff.
    loss_bf16 = supcon_loss(features, labels, temperature)
    jax.block_until_ready(loss_bf16)
    assert jnp.allclose(loss_bf16, ref, rtol=5e-2, atol=5e-2), (loss_bf16, ref)

    # --- non-tile-multiple batch to exercise the padding path ----------------
    B2, D2 = 10, 32
    feats2 = jax.random.normal(jax.random.PRNGKey(1), (B2, D2), dtype=jnp.float32)
    labels2 = jnp.array([0, 0, 1, 1, 2, 2, 0, 1, 2, 0], dtype=jnp.int32)
    ref2 = _reference_supcon(feats2, labels2, temperature)
    loss2 = supcon_loss(feats2, labels2, temperature, matmul_dtype=jnp.float32)
    jax.block_until_ready(loss2)
    assert jnp.allclose(loss2, ref2, rtol=1e-4, atol=1e-4), (loss2, ref2)

    print("KERNEL_OK")
</pallas_src>

<mosaic_0001>
module attributes {stable_mosaic.version = 11 : i64} {
  func.func @_supcon_tile_kernel(%arg0: i32, %arg1: i32, %arg2: memref<128x128xf32, #tpu.memory_space<vmem>>, %arg3: memref<128x128xf32, #tpu.memory_space<vmem>>, %arg4: memref<128x1xi32, #tpu.memory_space<vmem>>, %arg5: memref<1x128xi32, #tpu.memory_space<vmem>>, %arg6: memref<128x1xf32, #tpu.memory_space<vmem>>, %arg7: memref<128x1xf32, #tpu.memory_space<vmem>>, %arg8: memref<128x1xf32, #tpu.memory_space<vmem>>, %arg9: memref<128x1xf32, #tpu.memory_space<vmem>>, %arg10: memref<128x1xf32, #tpu.memory_space<vmem>>) attributes {dimension_semantics = [#tpu.dimension_semantics<parallel>, #tpu.dimension_semantics<arbitrary>], iteration_bounds = array<i64: 1, 1>, scalar_prefetch = 0 : i64, scratch_operands = 3 : i64, tpu.core_type = #tpu.core_type<tc>, window_params = [{transform_indices = @transform_0, window_bounds = array<i64: 128, 128>}, {transform_indices = @transform_1, window_bounds = array<i64: 128, 128>}, {transform_indices = @transform_2, window_bounds = array<i64: 128, 1>}, {transform_indices = @transform_3, window_bounds = array<i64: 1, 128>}, {transform_indices = @transform_4, window_bounds = array<i64: 128, 1>}, {transform_indices = @transform_5, window_bounds = array<i64: 128, 1>}]} {
    %c0_i32 = arith.constant 0 : i32
    %0 = arith.cmpi eq, %arg1, %c0_i32 : i32
    %1 = arith.extui %0 : i1 to i32
    %c0_i32_0 = arith.constant 0 : i32
    %2 = arith.cmpi ne, %1, %c0_i32_0 : i32
    scf.if %2 {
      %cst_29 = arith.constant 0xFF800000 : f32
      %59 = vector.broadcast %cst_29 : f32 to vector<128x1xf32>
      %c0_30 = arith.constant 0 : index
      %c0_31 = arith.constant 0 : index
      %60 = vector.load %arg8[%c0_30, %c0_31] : memref<128x1xf32, #tpu.memory_space<vmem>>, vector<128x1xf32>
      tpu.vector_store %arg8[%c0_30, %c0_31], %59 {strides = array<i32>} : memref<128x1xf32, #tpu.memory_space<vmem>>, vector<128x1xf32>,
      %cst_32 = arith.constant 0.000000e+00 : f32
      %61 = vector.broadcast %cst_32 : f32 to vector<128x1xf32>
      %c0_33 = arith.constant 0 : index
      %c0_34 = arith.constant 0 : index
      %62 = vector.load %arg9[%c0_33, %c0_34] : memref<128x1xf32, #tpu.memory_space<vmem>>, vector<128x1xf32>
      tpu.vector_store %arg9[%c0_33, %c0_34], %61 {strides = array<i32>} : memref<128x1xf32, #tpu.memory_space<vmem>>, vector<128x1xf32>,
      %cst_35 = arith.constant 0.000000e+00 : f32
      %63 = vector.broadcast %cst_35 : f32 to vector<128x1xf32>
      %c0_36 = arith.constant 0 : index
      %c0_37 = arith.constant 0 : index
      %64 = vector.load %arg10[%c0_36, %c0_37] : memref<128x1xf32, #tpu.memory_space<vmem>>, vector<128x1xf32>
      tpu.vector_store %arg10[%c0_36, %c0_37], %63 {strides = array<i32>} : memref<128x1xf32, #tpu.memory_space<vmem>>, vector<128x1xf32>,
    } else {
    }
    %c0 = arith.constant 0 : index
    %c0_1 = arith.constant 0 : index
    %3 = vector.load %arg2[%c0, %c0_1] : memref<128x128xf32, #tpu.memory_space<vmem>>, vector<128x128xf32>
    %c0_2 = arith.constant 0 : index
    %c0_3 = arith.constant 0 : index
    %4 = vector.load %arg3[%c0_2, %c0_3] : memref<128x128xf32, #tpu.memory_space<vmem>>, vector<128x128xf32>
    %cst = arith.constant dense<0.000000e+00> : vector<128x128xf32>
    %5 = tpu.matmul %3, %4, %cst {dimension_numbers = #tpu.dot_dimension_numbers<[1], [0], [0], [1], [0, 0, 1, 1], [], []>} : vector<128x128xf32>, vector<128x128xf32>, vector<128x128xf32> -> vector<128x128xf32>
    %c128_i32 = arith.constant 128 : i32
    %6 = arith.muli %arg0, %c128_i32 : i32
    %7 = tpu.iota {dimensions = array<i32: 0>} : vector<128x1xi32>
    %8 = vector.broadcast %6 : i32 to vector<128x1xi32>
    %9 = arith.addi %8, %7 : vector<128x1xi32>
    %c128_i32_4 = arith.constant 128 : i32
    %10 = arith.muli %arg1, %c128_i32_4 : i32
    %11 = tpu.iota {dimensions = array<i32: 1>} : vector<1x128xi32>
    %12 = vector.broadcast %10 : i32 to vector<1x128xi32>
    %13 = arith.addi %12, %11 : vector<1x128xi32>
    %14 = vector.broadcast %9 : vector<128x1xi32> to vector<128x128xi32>
    %15 = vector.broadcast %13 : vector<1x128xi32> to vector<128x128xi32>
    %16 = arith.cmpi ne, %14, %15 : vector<128x128xi32>
    %c8_i32 = arith.constant 8 : i32
    %17 = vector.broadcast %c8_i32 : i32 to vector<1x128xi32>
    %18 = arith.cmpi slt, %13, %17 : vector<1x128xi32>
    %19 = vector.broadcast %18 : vector<1x128xi1> to vector<128x128xi1>
    %20 = arith.andi %16, %19 : vector<128x128xi1>
    %cst_5 = arith.constant 0xFF800000 : f32
    %21 = vector.shape_cast %18 : vector<1x128xi1> to vector<1x128xi1>
    %22 = vector.broadcast %21 : vector<1x128xi1> to vector<128x128xi1>
    %23 = vector.broadcast %cst_5 : f32 to vector<128x128xf32>
    %24 = arith.select %22, %5, %23 : vector<128x128xi1>, vector<128x128xf32>
    %c0_6 = arith.constant 0 : index
    %c0_7 = arith.constant 0 : index
    %25 = vector.load %arg4[%c0_6, %c0_7] : memref<128x1xi32, #tpu.memory_space<vmem>>, vector<128x1xi32>
    %c0_8 = arith.constant 0 : index
    %c0_9 = arith.constant 0 : index
    %26 = vector.load %arg5[%c0_8, %c0_9] : memref<1x128xi32, #tpu.memory_space<vmem>>, vector<1x128xi32>
    %27 = vector.broadcast %25 : vector<128x1xi32> to vector<128x128xi32>
    %28 = vector.broadcast %26 : vector<1x128xi32> to vector<128x128xi32>
    %29 = arith.cmpi eq, %27, %28 : vector<128x128xi32>
    %30 = arith.andi %29, %20 : vector<128x128xi1>
    %c0_10 = arith.constant 0 : index
    %c0_11 = arith.constant 0 : index
    %31 = vector.load %arg8[%c0_10, %c0_11] : memref<128x1xf32, #tpu.memory_space<vmem>>, vector<128x1xf32>
    %cst_12 = arith.constant dense<0xFF800000> : vector<128xf32>
    %32 = vector.multi_reduction <maximumf>, %24, %cst_12 [1] : vector<128x128xf32> to vector<128xf32>
    %33 = vector.shape_cast %32 : vector<128xf32> to vector<128x1xf32>
    %34 = arith.maximumf %31, %33 : vector<128x1xf32>
    %35 = vector.broadcast %34 : vector<128x1xf32> to vector<128x128xf32>
    %36 = arith.subf %5, %35 : vector<128x128xf32>
    %37 = math.exp %36 : vector<128x128xf32>
    %cst_13 = arith.constant 0.000000e+00 : f32
    %38 = vector.broadcast %cst_13 : f32 to vector<128x128xf32>
    %39 = arith.select %20, %37, %38 : vector<128x128xi1>, vector<128x128xf32>
    %40 = arith.subf %31, %34 : vector<128x1xf32>
    %41 = math.exp %40 : vector<128x1xf32>
    %c0_14 = arith.constant 0 : index
    %c0_15 = arith.constant 0 : index
    %42 = vector.load %arg9[%c0_14, %c0_15] : memref<128x1xf32, #tpu.memory_space<vmem>>, vector<128x1xf32>
    %43 = arith.mulf %41, %42 : vector<128x1xf32>
    %cst_16 = arith.constant dense<0.000000e+00> : vector<128xf32>
    %44 = vector.multi_reduction <add>, %39, %cst_16 [1] : vector<128x128xf32> to vector<128xf32>
    %45 = vector.shape_cast %44 : vector<128xf32> to vector<128x1xf32>
    %46 = arith.addf %43, %45 : vector<128x1xf32>
    %c0_17 = arith.constant 0 : index
    %c0_18 = arith.constant 0 : index
    %47 = vector.load %arg9[%c0_17, %c0_18] : memref<128x1xf32, #tpu.memory_space<vmem>>, vector<128x1xf32>
    tpu.vector_store %arg9[%c0_17, %c0_18], %46 {strides = array<i32>} : memref<128x1xf32, #tpu.memory_space<vmem>>, vector<128x1xf32>,
    %c0_19 = arith.constant 0 : index
    %c0_20 = arith.constant 0 : index
    %48 = vector.load %arg10[%c0_19, %c0_20] : memref<128x1xf32, #tpu.memory_space<vmem>>, vector<128x1xf32>
    %cst_21 = arith.constant 0.000000e+00 : f32
    %49 = vector.broadcast %cst_21 : f32 to vector<128x128xf32>
    %50 = arith.select %30, %5, %49 : vector<128x128xi1>, vector<128x128xf32>
    %cst_22 = arith.constant dense<0.000000e+00> : vector<128xf32>
    %51 = vector.multi_reduction <add>, %50, %cst_22 [1] : vector<128x128xf32> to vector<128xf32>
    %52 = vector.shape_cast %51 : vector<128xf32> to vector<128x1xf32>
    %53 = arith.addf %48, %52 : vector<128x1xf32>
    %c0_23 = arith.constant 0 : index
    %c0_24 = arith.constant 0 : index
    %54 = vector.load %arg10[%c0_23, %c0_24] : memref<128x1xf32, #tpu.memory_space<vmem>>, vector<128x1xf32>
    tpu.vector_store %arg10[%c0_23, %c0_24], %53 {strides = array<i32>} : memref<128x1xf32, #tpu.memory_space<vmem>>, vector<128x1xf32>,
    %c0_25 = arith.constant 0 : index
    %c0_26 = arith.constant 0 : index
    %55 = vector.load %arg8[%c0_25, %c0_26] : memref<128x1xf32, #tpu.memory_space<vmem>>, vector<128x1xf32>
    tpu.vector_store %arg8[%c0_25, %c0_26], %34 {strides = array<i32>} : memref<128x1xf32, #tpu.memory_space<vmem>>, vector<128x1xf32>,
    %c0_i32_27 = arith.constant 0 : i32
    %56 = arith.cmpi eq, %arg1, %c0_i32_27 : i32
    %57 = arith.extui %56 : i1 to i32
    %c0_i32_28 = arith.constant 0 : i32
    %58 = arith.cmpi ne, %57, %c0_i32_28 : i32
    scf.if %58 {
      %c0_29 = arith.constant 0 : index
      %c0_30 = arith.constant 0 : index
      %59 = vector.load %arg10[%c0_29, %c0_30] : memref<128x1xf32, #tpu.memory_space<vmem>>, vector<128x1xf32>
      %c0_31 = arith.constant 0 : index
      %c0_32 = arith.constant 0 : index
      %60 = vector.load %arg6[%c0_31, %c0_32] : memref<128x1xf32, #tpu.memory_space<vmem>>, vector<128x1xf32>
      %61 = arith.mulf %59, %60 : vector<128x1xf32>
      %c0_33 = arith.constant 0 : index
      %c0_34 = arith.constant 0 : index
      %62 = vector.load %arg8[%c0_33, %c0_34] : memref<128x1xf32, #tpu.memory_space<vmem>>, vector<128x1xf32>
      %63 = arith.subf %61, %62 : vector<128x1xf32>
      %c0_35 = arith.constant 0 : index
      %c0_36 = arith.constant 0 : index
      %64 = vector.load %arg9[%c0_35, %c0_36] : memref<128x1xf32, #tpu.memory_space<vmem>>, vector<128x1xf32>
      %65 = math.log %64 : vector<128x1xf32>
      %66 = arith.subf %63, %65 : vector<128x1xf32>
      %cst_37 = arith.constant 0.000000e+00 : f32
      %67 = vector.broadcast %cst_37 : f32 to vector<128x1xf32>
      %68 = arith.subf %67, %66 : vector<128x1xf32>
      %c0_38 = arith.constant 0 : index
      %c0_39 = arith.constant 0 : index
      %69 = vector.load %arg7[%c0_38, %c0_39] : memref<128x1xf32, #tpu.memory_space<vmem>>, vector<128x1xf32>
      tpu.vector_store %arg7[%c0_38, %c0_39], %68 {strides = array<i32>} : memref<128x1xf32, #tpu.memory_space<vmem>>, vector<128x1xf32>,
    } else {
    }
    return
  }
  func.func @transform_0(%arg0: i32, %arg1: i32) -> (i32, i32) {
    %c0_i32 = arith.constant 0 : i32
    %c0_i32_0 = arith.constant 0 : i32
    return %arg0, %c0_i32 : i32, i32
  }
  func.func @transform_1(%arg0: i32, %arg1: i32) -> (i32, i32) {
    %c0_i32 = arith.constant 0 : i32
    %c0_i32_0 = arith.constant 0 : i32
    return %c0_i32, %arg1 : i32, i32
  }
  func.func @transform_2(%arg0: i32, %arg1: i32) -> (i32, i32) {
    %c0_i32 = arith.constant 0 : i32
    %c0_i32_0 = arith.constant 0 : i32
    return %arg0, %c0_i32 : i32, i32
  }
  func.func @transform_3(%arg0: i32, %arg1: i32) -> (i32, i32) {
    %c0_i32 = arith.constant 0 : i32
    %c0_i32_0 = arith.constant 0 : i32
    return %c0_i32, %arg1 : i32, i32
  }
  func.func @transform_4(%arg0: i32, %arg1: i32) -> (i32, i32) {
    %c0_i32 = arith.constant 0 : i32
    %c0_i32_0 = arith.constant 0 : i32
    return %arg0, %c0_i32 : i32, i32
  }
  func.func @transform_5(%arg0: i32, %arg1: i32) -> (i32, i32) {
    %c0_i32 = arith.constant 0 : i32
    %c0_i32_0 = arith.constant 0 : i32
    return %arg0, %c0_i32 : i32, i32
  }
}

</mosaic_0001>

<llo_original>
// kernel: tpu_custom_call.1
$region0: #{tpu_custom_call.1}
  #allocation0 [shape = 'u32[]', space=smem, size = 0x4, offset = 0x4, fixed_abs, tag = 'smem constant byte address 0x4 - core index']
  #allocation1 [shape = 'u32[144,128]{1,0:T(1,128)}', space=vmem, size = 0x12000, scoped, tag = 'internal scratch']
  #allocation2 [shape = 'f32[128,1]{1,0:T(8,128)}', space=vmem, size = 0x10000, scoped, tag = 'scratch operand']
  #allocation3 [shape = 'f32[128,1]{1,0:T(8,128)}', space=vmem, size = 0x10000, scoped, tag = 'scratch operand']
  #allocation4 [shape = 'f32[128,1]{1,0:T(8,128)}', space=vmem, size = 0x10000, scoped, tag = 'scratch operand']
  %s0 = inlined_call_operand.vmem [shape: f32[128,128], index: 0, kind: input, shape index: {}]
  %s1 = inlined_call_operand.vmem [shape: f32[128,128], index: 1, kind: input, shape index: {}]
  %s2 = inlined_call_operand.vmem [shape: s32[128,1], index: 2, kind: input, shape index: {}]
  %s3 = inlined_call_operand.vmem [shape: s32[1,128], index: 3, kind: input, shape index: {}]
  %s4 = inlined_call_operand.vmem [shape: f32[128,1], index: 4, kind: input, shape index: {}]
  %s5 = inlined_call_operand.vmem [shape: f32[128,1], index: 5, kind: output, shape index: {}]
  %s6 = sld [smem:[#allocation0]]
  $region38: #{tpu_custom_call.1} parent=0
    _
  %s8 = ssub.s32 1, %s6
  %s9 = scalar_select 0, %s8, %s6
  // Predicated region
  $region2: #{tpu_custom_call.1} parent=0 // pred_check
    _
  $region3: #{tpu_custom_call.1} parent=0 // pred_check_branch
    %11 = sbr.rel (0) target = $region5
  $region4: #{tpu_custom_call.1} parent=0 // pred_region
    _
  $region5: #{tpu_custom_call.1} parent=0 // pred_fallthru
    _
  // Predicated region
  $region6: #{tpu_custom_call.1} parent=0 // pred_check
    _
  $region7: #{tpu_custom_call.1} parent=0 // pred_check_branch
    %13 = sbr.rel (0) target = $region9
  $region8: #{tpu_custom_call.1} parent=0 // pred_region
    _
  $region9: #{tpu_custom_call.1} parent=0 // pred_fallthru
    _
  // Predicated region
  $region10: #{tpu_custom_call.1} parent=0 // pred_check
    _
  $region11: #{tpu_custom_call.1} parent=0 // pred_check_branch
    %15 = sbr.rel (0) target = $region13
  $region12: #{tpu_custom_call.1} parent=0 // pred_region
    _
  $region13: #{tpu_custom_call.1} parent=0 // pred_fallthru
    _
  // Predicated region
  $region14: #{tpu_custom_call.1} parent=0 // pred_check
    _
  $region15: #{tpu_custom_call.1} parent=0 // pred_check_branch
    %17 = sbr.rel (0) target = $region17
  $region16: #{tpu_custom_call.1} parent=0 // pred_region
    _
  $region17: #{tpu_custom_call.1} parent=0 // pred_fallthru
    _
  // Predicated region
  $region18: #{tpu_custom_call.1} parent=0 // pred_check
    _
  $region19: #{tpu_custom_call.1} parent=0 // pred_check_branch
    %19 = sbr.rel (0) target = $region21
  $region20: #{tpu_custom_call.1} parent=0 // pred_region
    _
  $region21: #{tpu_custom_call.1} parent=0 // pred_fallthru
    _
  %p20 = scmp.eq.s32.totalorder 0, 0
  // Predicated region
  $region22: #{tpu_custom_call.1} parent=0 // pred_check
    %p21 = pneg %p20
  $region23: #{tpu_custom_call.1} parent=0 // pred_check_branch
    %23 = sbr.rel (%p21) target = $region25
  $region24: #{tpu_custom_call.1} parent=0 // pred_region
    %vm24 = vcmask 7168
    %25 = vst.msk [vmem:[#allocation2] sm:$0xff] %vm24, -inf
    %26 = vst.msk [vmem:[#allocation2 + $0x8] sm:$0xff] %vm24, -inf
    %27 = vst.msk [vmem:[#allocation2 + $0x10] sm:$0xff] %vm24, -inf
    %28 = vst.msk [vmem:[#allocation2 + $0x18] sm:$0xff] %vm24, -inf
    %29 = vst.msk [vmem:[#allocation2 + $0x20] sm:$0xff] %vm24, -inf
    %30 = vst.msk [vmem:[#allocation2 + $0x28] sm:$0xff] %vm24, -inf
    %31 = vst.msk [vmem:[#allocation2 + $0x30] sm:$0xff] %vm24, -inf
    %32 = vst.msk [vmem:[#allocation2 + $0x38] sm:$0xff] %vm24, -inf
    %33 = vst.msk [vmem:[#allocation2 + $0x40] sm:$0xff] %vm24, -inf
    %34 = vst.msk [vmem:[#allocation2 + $0x48] sm:$0xff] %vm24, -inf
    %35 = vst.msk [vmem:[#allocation2 + $0x50] sm:$0xff] %vm24, -inf
    %36 = vst.msk [vmem:[#allocation2 + $0x58] sm:$0xff] %vm24, -inf
    %37 = vst.msk [vmem:[#allocation2 + $0x60] sm:$0xff] %vm24, -inf
    %38 = vst.msk [vmem:[#allocation2 + $0x68] sm:$0xff] %vm24, -inf
    %39 = vst.msk [vmem:[#allocation2 + $0x70] sm:$0xff] %vm24, -inf
    %40 = vst.msk [vmem:[#allocation2 + $0x78] sm:$0xff] %vm24, -inf
    %41 = vst.msk [vmem:[#allocation3] sm:$0xff] %vm24, 0.0
    %42 = vst.msk [vmem:[#allocation3 + $0x8] sm:$0xff] %vm24, 0.0
    %43 = vst.msk [vmem:[#allocation3 + $0x10] sm:$0xff] %vm24, 0.0
    %44 = vst.msk [vmem:[#allocation3 + $0x18] sm:$0xff] %vm24, 0.0
    %45 = vst.msk [vmem:[#allocation3 + $0x20] sm:$0xff] %vm24, 0.0
    %46 = vst.msk [vmem:[#allocation3 + $0x28] sm:$0xff] %vm24, 0.0
    %47 = vst.msk [vmem:[#allocation3 + $0x30] sm:$0xff] %vm24, 0.0
    %48 = vst.msk [vmem:[#allocation3 + $0x38] sm:$0xff] %vm24, 0.0
    %49 = vst.msk [vmem:[#allocation3 + $0x40] sm:$0xff] %vm24, 0.0
    %50 = vst.msk [vmem:[#allocation3 + $0x48] sm:$0xff] %vm24, 0.0
    %51 = vst.msk [vmem:[#allocation3 + $0x50] sm:$0xff] %vm24, 0.0
    %52 = vst.msk [vmem:[#allocation3 + $0x58] sm:$0xff] %vm24, 0.0
    %53 = vst.msk [vmem:[#allocation3 + $0x60] sm:$0xff] %vm24, 0.0
    %54 = vst.msk [vmem:[#allocation3 + $0x68] sm:$0xff] %vm24, 0.0
    %55 = vst.msk [vmem:[#allocation3 + $0x70] sm:$0xff] %vm24, 0.0
    %56 = vst.msk [vmem:[#allocation3 + $0x78] sm:$0xff] %vm24, 0.0
    %57 = vst.msk [vmem:[#allocation4] sm:$0xff] %vm24, 0.0
    %58 = vst.msk [vmem:[#allocation4 + $0x8] sm:$0xff] %vm24, 0.0
    %59 = vst.msk [vmem:[#allocation4 + $0x10] sm:$0xff] %vm24, 0.0
    %60 = vst.msk [vmem:[#allocation4 + $0x18] sm:$0xff] %vm24, 0.0
    %61 = vst.msk [vmem:[#allocation4 + $0x20] sm:$0xff] %vm24, 0.0
    %62 = vst.msk [vmem:[#allocation4 + $0x28] sm:$0xff] %vm24, 0.0
    %63 = vst.msk [vmem:[#allocation4 + $0x30] sm:$0xff] %vm24, 0.0
    %64 = vst.msk [vmem:[#allocation4 + $0x38] sm:$0xff] %vm24, 0.0
    %65 = vst.msk [vmem:[#allocation4 + $0x40] sm:$0xff] %vm24, 0.0
    %66 = vst.msk [vmem:[#allocation4 + $0x48] sm:$0xff] %vm24, 0.0
    %67 = vst.msk [vmem:[#allocation4 + $0x50] sm:$0xff] %vm24, 0.0
    %68 = vst.msk [vmem:[#allocation4 + $0x58] sm:$0xff] %vm24, 0.0
    %69 = vst.msk [vmem:[#allocation4 + $0x60] sm:$0xff] %vm24, 0.0
    %70 = vst.msk [vmem:[#allocation4 + $0x68] sm:$0xff] %vm24, 0.0
    %71 = vst.msk [vmem:[#allocation4 + $0x70] sm:$0xff] %vm24, 0.0
    %72 = vst.msk [vmem:[#allocation4 + $0x78] sm:$0xff] %vm24, 0.0
  $region25: #{tpu_custom_call.1} parent=0 // pred_fallthru
    _
  %v73 = vld [vmem:[%s0] sm:$0xff]
  %v74 = vld [vmem:[%s0 + $0x8] sm:$0xff]
  %v75 = vld [vmem:[%s0 + $0x10] sm:$0xff]
  %v76 = vld [vmem:[%s0 + $0x18] sm:$0xff]
  %v77 = vld [vmem:[%s0 + $0x20] sm:$0xff]
  %v78 = vld [vmem:[%s0 + $0x28] sm:$0xff]
  %v79 = vld [vmem:[%s0 + $0x30] sm:$0xff]
  %v80 = vld [vmem:[%s0 + $0x38] sm:$0xff]
  %v81 = vld [vmem:[%s0 + $0x40] sm:$0xff]
  %v82 = vld [vmem:[%s0 + $0x48] sm:$0xff]
  %v83 = vld [vmem:[%s0 + $0x50] sm:$0xff]
  %v84 = vld [vmem:[%s0 + $0x58] sm:$0xff]
  %v85 = vld [vmem:[%s0 + $0x60] sm:$0xff]
  %v86 = vld [vmem:[%s0 + $0x68] sm:$0xff]
  %v87 = vld [vmem:[%s0 + $0x70] sm:$0xff]
  %v88 = vld [vmem:[%s0 + $0x78] sm:$0xff]
  %v89 = vld [vmem:[%s1] sm:$0xff]
  %v90 = vld [vmem:[%s1 + $0x8] sm:$0xff]
  %v91 = vld [vmem:[%s1 + $0x10] sm:$0xff]
  %v92 = vld [vmem:[%s1 + $0x18] sm:$0xff]
  %v93 = vld [vmem:[%s1 + $0x20] sm:$0xff]
  %v94 = vld [vmem:[%s1 + $0x28] sm:$0xff]
  %v95 = vld [vmem:[%s1 + $0x30] sm:$0xff]
  %v96 = vld [vmem:[%s1 + $0x38] sm:$0xff]
  %v97 = vld [vmem:[%s1 + $0x40] sm:$0xff]
  %v98 = vld [vmem:[%s1 + $0x48] sm:$0xff]
  %v99 = vld [vmem:[%s1 + $0x50] sm:$0xff]
  %v100 = vld [vmem:[%s1 + $0x58] sm:$0xff]
  %v101 = vld [vmem:[%s1 + $0x60] sm:$0xff]
  %v102 = vld [vmem:[%s1 + $0x68] sm:$0xff]
  %v103 = vld [vmem:[%s1 + $0x70] sm:$0xff]
  %v104 = vld [vmem:[%s1 + $0x78] sm:$0xff]
  %105 = vmatprep.subr.mxu0 0.0
  %106 = vmatpush1.msra.mxu0 %v89
  %107 = vmatprep.subr.mxu0 0.0
  %108 = vmatpush1.msra.mxu0 %v90
  %109 = vmatprep.subr.mxu0 0.0
  %110 = vmatpush1.msra.mxu0 %v91
  %111 = vmatprep.subr.mxu0 0.0
  %112 = vmatpush1.msra.mxu0 %v92
  %113 = vmatprep.subr.mxu0 0.0
  %114 = vmatpush1.msra.mxu0 %v93
  %115 = vmatprep.subr.mxu0 0.0
  %116 = vmatpush1.msra.mxu0 %v94
  %117 = vmatprep.subr.mxu0 0.0
  %118 = vmatpush1.msra.mxu0 %v95
  %119 = vmatprep.subr.mxu0 0.0
  %120 = vmatpush1.msra.mxu0 %v96
  %121 = vmatprep.subr.mxu0 0.0
  %122 = vmatpush1.msra.mxu0 %v97
  %123 = vmatprep.subr.mxu0 0.0
  %124 = vmatpush1.msra.mxu0 %v98
  %125 = vmatprep.subr.mxu0 0.0
  %126 = vmatpush1.msra.mxu0 %v99
  %127 = vmatprep.subr.mxu0 0.0
  %128 = vmatpush1.msra.mxu0 %v100
  %129 = vmatprep.subr.mxu0 0.0
  %130 = vmatpush1.msra.mxu0 %v101
  %131 = vmatprep.subr.mxu0 0.0
  %132 = vmatpush1.msra.mxu0 %v102
  %133 = vmatprep.subr.mxu0 0.0
  %134 = vmatpush1.msra.mxu0 %v103
  %135 = vmatprep.subr.mxu0 0.0
  %136 = vmatpush1.msra.mxu0 %v104
  %137 = vmatprep.subr.mxu0 0.0
  %138 = vmatpush1.msra.mxu0 0.0
  %139 = vmatprep.subr.mxu0 0.0
  %140 = vmatpush1.msra.mxu0 0.0
  %141 = vmatprep.subr.mxu0 0.0
  %142 = vmatpush1.msra.mxu0 0.0
  %143 = vmatprep.subr.mxu0 0.0
  %144 = vmatpush1.msra.mxu0 0.0
  %145 = vmatprep.subr.mxu0 0.0
  %146 = vmatpush1.msra.mxu0 0.0
  %147 = vmatprep.subr.mxu0 0.0
  %148 = vmatpush1.msra.mxu0 0.0
  %149 = vmatprep.subr.mxu0 0.0
  %150 = vmatpush1.msra.mxu0 0.0
  %151 = vmatprep.subr.mxu0 0.0
  %152 = vmatpush1.msra.mxu0 0.0
  %153 = vmatprep.subr.mxu0 0.0
  %154 = vmatpush1.msra.mxu0 0.0
  %155 = vmatprep.subr.mxu0 0.0
  %156 = vmatpush1.msra.mxu0 0.0
  %157 = vmatprep.subr.mxu0 0.0
  %158 = vmatpush1.msra.mxu0 0.0
  %159 = vmatprep.subr.mxu0 0.0
  %160 = vmatpush1.msra.mxu0 0.0
  %161 = vmatprep.subr.mxu0 0.0
  %162 = vmatpush1.msra.mxu0 0.0
  %163 = vmatprep.subr.mxu0 0.0
  %164 = vmatpush1.msra.mxu0 0.0
  %165 = vmatprep.subr.mxu0 0.0
  %166 = vmatpush1.msra.mxu0 0.0
  %167 = vmatprep.subr.mxu0 0.0
  %168 = vmatpush1.msra.mxu0 0.0
  %169 = vmatprep.mubr.f32.mxu0 0.0
  %170 = vmatmul.mubr.f32.gmra.mrb[0].mxu0 %v73
  %v171 = vpop.f32.mrb[0].mxu0
  %v172 = vadd.f32 0.0, %v171
  %v173 = vpop.f32.mrb[0].mxu0
  %174 = vmatprep.mubr.f32.mxu0 0.0
  %175 = vmatmul.mubr.f32.gmra.mrb[0].mxu0 %v74
  %v176 = vpop.f32.mrb[0].mxu0
  %v177 = vadd.f32 0.0, %v176
  %v178 = vpop.f32.mrb[0].mxu0
  %179 = vmatprep.mubr.f32.mxu0 0.0
  %180 = vmatmul.mubr.f32.gmra.mrb[0].mxu0 %v75
  %v181 = vpop.f32.mrb[0].mxu0
  %v182 = vadd.f32 0.0, %v181
  %v183 = vpop.f32.mrb[0].mxu0
  %184 = vmatprep.mubr.f32.mxu0 0.0
  %185 = vmatmul.mubr.f32.gmra.mrb[0].mxu0 %v76
  %v186 = vpop.f32.mrb[0].mxu0
  %v187 = vadd.f32 0.0, %v186
  %v188 = vpop.f32.mrb[0].mxu0
  %189 = vmatprep.mubr.f32.mxu0 0.0
  %190 = vmatmul.mubr.f32.gmra.mrb[0].mxu0 %v77
  %v191 = vpop.f32.mrb[0].mxu0
  %v192 = vadd.f32 0.0, %v191
  %v193 = vpop.f32.mrb[0].mxu0
  %194 = vmatprep.mubr.f32.mxu0 0.0
  %195 = vmatmul.mubr.f32.gmra.mrb[0].mxu0 %v78
  %v196 = vpop.f32.mrb[0].mxu0
  %v197 = vadd.f32 0.0, %v196
  %v198 = vpop.f32.mrb[0].mxu0
  %199 = vmatprep.mubr.f32.mxu0 0.0
  %200 = vmatmul.mubr.f32.gmra.mrb[0].mxu0 %v79
  %v201 = vpop.f32.mrb[0].mxu0
  %v202 = vadd.f32 0.0, %v201
  %v203 = vpop.f32.mrb[0].mxu0
  %204 = vmatprep.mubr.f32.mxu0 0.0
  %205 = vmatmul.mubr.f32.gmra.mrb[0].mxu0 %v80
  %v206 = vpop.f32.mrb[0].mxu0
  %v207 = vadd.f32 0.0, %v206
  %v208 = vpop.f32.mrb[0].mxu0
  %209 = vmatprep.mubr.f32.mxu0 0.0
  %210 = vmatmul.mubr.f32.gmra.mrb[0].mxu0 %v81
  %v211 = vpop.f32.mrb[0].mxu0
  %v212 = vadd.f32 0.0, %v211
  %v213 = vpop.f32.mrb[0].mxu0
  %214 = vmatprep.mubr.f32.mxu0 0.0
  %215 = vmatmul.mubr.f32.gmra.mrb[0].mxu0 %v82
  %v216 = vpop.f32.mrb[0].mxu0
  %v217 = vadd.f32 0.0, %v216
  %v218 = vpop.f32.mrb[0].mxu0
  %219 = vmatprep.mubr.f32.mxu0 0.0
  %220 = vmatmul.mubr.f32.gmra.mrb[0].mxu0 %v83
  %v221 = vpop.f32.mrb[0].mxu0
  %v222 = vadd.f32 0.0, %v221
  %v223 = vpop.f32.mrb[0].mxu0
  %224 = vmatprep.mubr.f32.mxu0 0.0
  %225 = vmatmul.mubr.f32.gmra.mrb[0].mxu0 %v84
  %v226 = vpop.f32.mrb[0].mxu0
  %v227 = vadd.f32 0.0, %v226
  %v228 = vpop.f32.mrb[0].mxu0
  %229 = vmatprep.mubr.f32.mxu0 0.0
  %230 = vmatmul.mubr.f32.gmra.mrb[0].mxu0 %v85
  %v231 = vpop.f32.mrb[0].mxu0
  %v232 = vadd.f32 0.0, %v231
  %v233 = vpop.f32.mrb[0].mxu0
  %234 = vmatprep.mubr.f32.mxu0 0.0
  %235 = vmatmul.mubr.f32.gmra.mrb[0].mxu0 %v86
  %v236 = vpop.f32.mrb[0].mxu0
  %v237 = vadd.f32 0.0, %v236
  %v238 = vpop.f32.mrb[0].mxu0
  %239 = vmatprep.mubr.f32.mxu0 0.0
  %240 = vmatmul.mubr.f32.gmra.mrb[0].mxu0 %v87
  %v241 = vpop.f32.mrb[0].mxu0
  %v242 = vadd.f32 0.0, %v241
  %v243 = vpop.f32.mrb[0].mxu0
  %244 = vmatprep.mubr.f32.mxu0 0.0
  %245 = vmatmul.mubr.f32.gmra.mrb[0].mxu0 %v88
  %v246 = vpop.f32.mrb[0].mxu0
  %v247 = vadd.f32 0.0, %v246
  %v248 = vpop.f32.mrb[0].mxu0
  %249 = vdwg.mxu0
  %s250 = smul.u32 0, 128
  %v251 = vlaneseq
  %v252 = vshrl.u32 %v251, 7
  %v253 = vadd.s32 %v252, 8
  %v254 = vadd.s32 %v252, 16
  %v255 = vadd.s32 %v252, 24
  %v256 = vadd.s32 %v252, 32
  %v257 = vadd.s32 %v252, 40
  %v258 = vadd.s32 %v252, 48
  %v259 = vadd.s32 %v252, 56
  %v260 = vadd.s32 %v252, 64
  %v261 = vadd.s32 %v252, 72
  %v262 = vadd.s32 %v252, 80
  %v263 = vadd.s32 %v252, 88
  %v264 = vadd.s32 %v252, 96
  %v265 = vadd.s32 %v252, 104
  %v266 = vadd.s32 %v252, 112
  %v267 = vadd.s32 %v252, 120
  %v268 = vstv %s250
  %v269 = vadd.s32 %v268, %v252
  %v270 = vadd.s32 %v268, %v253
  %v271 = vadd.s32 %v268, %v254
  %v272 = vadd.s32 %v268, %v255
  %v273 = vadd.s32 %v268, %v256
  %v274 = vadd.s32 %v268, %v257
  %v275 = vadd.s32 %v268, %v258
  %v276 = vadd.s32 %v268, %v259
  %v277 = vadd.s32 %v268, %v260
  %v278 = vadd.s32 %v268, %v261
  %v279 = vadd.s32 %v268, %v262
  %v280 = vadd.s32 %v268, %v263
  %v281 = vadd.s32 %v268, %v264
  %v282 = vadd.s32 %v268, %v265
  %v283 = vadd.s32 %v268, %v266
  %v284 = vadd.s32 %v268, %v267
  %s285 = smul.u32 0, 128
  %v286 = vlaneseq
  %v287 = vand.u32 %v286, 127
  %v288 = vstv %s285
  %v289 = vadd.s32 %v288, %v287
  %vm290 = vcmp.ne.s32.totalorder %v269, %v289
  %vm291 = vcmp.ne.s32.totalorder %v270, %v289
  %vm292 = vcmp.ne.s32.totalorder %v271, %v289
  %vm293 = vcmp.ne.s32.totalorder %v272, %v289
  %vm294 = vcmp.ne.s32.totalorder %v273, %v289
  %vm295 = vcmp.ne.s32.totalorder %v274, %v289
  %vm296 = vcmp.ne.s32.totalorder %v275, %v289
  %vm297 = vcmp.ne.s32.totalorder %v276, %v289
  %vm298 = vcmp.ne.s32.totalorder %v277, %v289
  %vm299 = vcmp.ne.s32.totalorder %v278, %v289
  %vm300 = vcmp.ne.s32.totalorder %v279, %v289
  %vm301 = vcmp.ne.s32.totalorder %v280, %v289
  %vm302 = vcmp.ne.s32.totalorder %v281, %v289
  %vm303 = vcmp.ne.s32.totalorder %v282, %v289
  %vm304 = vcmp.ne.s32.totalorder %v283, %v289
  %vm305 = vcmp.ne.s32.totalorder %v284, %v289
  %vm306 = vcmp.lt.s32.totalorder %v289, 8
  %v307 = vsel %vm306, 1, 0
  %vm308 = vcmp.eq.s32.totalorder %v307, 1
  %vm309 = vmand %vm290, %vm308
  %vm310 = vmand %vm291, %vm308
  %vm311 = vmand %vm292, %vm308
  %vm312 = vmand %vm293, %vm308
  %vm313 = vmand %vm294, %vm308
  %vm314 = vmand %vm295, %vm308
  %vm315 = vmand %vm296, %vm308
  %vm316 = vmand %vm297, %vm308
  %vm317 = vmand %vm298, %vm308
  %vm318 = vmand %vm299, %vm308
  %vm319 = vmand %vm300, %vm308
  %vm320 = vmand %vm301, %vm308
  %vm321 = vmand %vm302, %vm308
  %vm322 = vmand %vm303, %vm308
  %vm323 = vmand %vm304, %vm308
  %vm324 = vmand %vm305, %vm308
  %v325 = vsel %vm308, %v172, -inf
  %v326 = vsel %vm308, %v177, -inf
  %v327 = vsel %vm308, %v182, -inf
  %v328 = vsel %vm308, %v187, -inf
  %v329 = vsel %vm308, %v192, -inf
  %v330 = vsel %vm308, %v197, -inf
  %v331 = vsel %vm308, %v202, -inf
  %v332 = vsel %vm308, %v207, -inf
  %v333 = vsel %vm308, %v212, -inf
  %v334 = vsel %vm308, %v217, -inf
  %v335 = vsel %vm308, %v222, -inf
  %v336 = vsel %vm308, %v227, -inf
  %v337 = vsel %vm308, %v232, -inf
  %v338 = vsel %vm308, %v237, -inf
  %v339 = vsel %vm308, %v242, -inf
  %v340 = vsel %vm308, %v247, -inf
  %v341 = vld [vmem:[%s2] sm:$0xff]
  %v342 = vld [vmem:[%s2 + $0x8] sm:$0xff]
  %v343 = vld [vmem:[%s2 + $0x10] sm:$0xff]
  %v344 = vld [vmem:[%s2 + $0x18] sm:$0xff]
  %v345 = vld [vmem:[%s2 + $0x20] sm:$0xff]
  %v346 = vld [vmem:[%s2 + $0x28] sm:$0xff]
  %v347 = vld [vmem:[%s2 + $0x30] sm:$0xff]
  %v348 = vld [vmem:[%s2 + $0x38] sm:$0xff]
  %v349 = vld [vmem:[%s2 + $0x40] sm:$0xff]
  %v350 = vld [vmem:[%s2 + $0x48] sm:$0xff]
  %v351 = vld [vmem:[%s2 + $0x50] sm:$0xff]
  %v352 = vld [vmem:[%s2 + $0x58] sm:$0xff]
  %v353 = vld [vmem:[%s2 + $0x60] sm:$0xff]
  %v354 = vld [vmem:[%s2 + $0x68] sm:$0xff]
  %v355 = vld [vmem:[%s2 + $0x70] sm:$0xff]
  %v356 = vld [vmem:[%s2 + $0x78] sm:$0xff]
  %v357 = vld [vmem:[%s3] sm:$0x1]
  %358 = vset.pattern.permute.xlu0 0
  %359 = vperm.xlu0 %358, %v341
  %v360 = vpop.permute.xlu0 %359
  %361 = vset.pattern.permute.xlu0 0
  %362 = vperm.xlu0 %361, %v342
  %v363 = vpop.permute.xlu0 %362
  %364 = vset.pattern.permute.xlu0 0
  %365 = vperm.xlu0 %364, %v343
  %v366 = vpop.permute.xlu0 %365
  %367 = vset.pattern.permute.xlu0 0
  %368 = vperm.xlu0 %367, %v344
  %v369 = vpop.permute.xlu0 %368
  %370 = vset.pattern.permute.xlu0 0
  %371 = vperm.xlu0 %370, %v345
  %v372 = vpop.permute.xlu0 %371
  %373 = vset.pattern.permute.xlu0 0
  %374 = vperm.xlu0 %373, %v346
  %v375 = vpop.permute.xlu0 %374
  %376 = vset.pattern.permute.xlu0 0
  %377 = vperm.xlu0 %376, %v347
  %v378 = vpop.permute.xlu0 %377
  %379 = vset.pattern.permute.xlu0 0
  %380 = vperm.xlu0 %379, %v348
  %v381 = vpop.permute.xlu0 %380
  %382 = vset.pattern.permute.xlu0 0
  %383 = vperm.xlu0 %382, %v349
  %v384 = vpop.permute.xlu0 %383
  %385 = vset.pattern.permute.xlu0 0
  %386 = vperm.xlu0 %385, %v350
  %v387 = vpop.permute.xlu0 %386
  %388 = vset.pattern.permute.xlu0 0
  %389 = vperm.xlu0 %388, %v351
  %v390 = vpop.permute.xlu0 %389
  %391 = vset.pattern.permute.xlu0 0
  %392 = vperm.xlu0 %391, %v352
  %v393 = vpop.permute.xlu0 %392
  %394 = vset.pattern.permute.xlu0 0
  %395 = vperm.xlu0 %394, %v353
  %v396 = vpop.permute.xlu0 %395
  %397 = vset.pattern.permute.xlu0 0
  %398 = vperm.xlu0 %397, %v354
  %v399 = vpop.permute.xlu0 %398
  %400 = vset.pattern.permute.xlu0 0
  %401 = vperm.xlu0 %400, %v355
  %v402 = vpop.permute.xlu0 %401
  %403 = vset.pattern.permute.xlu0 0
  %404 = vperm.xlu0 %403, %v356
  %v405 = vpop.permute.xlu0 %404
  %v406 = vlaneseq
  %v407 = vshrl.u32 %v406, 7
  %v408 = vsub.s32 0, %v407
  %v409 = vrot.slane %v357, %v408
  %vm410 = vcmp.eq.s32.totalorder %v360, %v409
  %vm411 = vcmp.eq.s32.totalorder %v363, %v409
  %vm412 = vcmp.eq.s32.totalorder %v366, %v409
  %vm413 = vcmp.eq.s32.totalorder %v369, %v409
  %vm414 = vcmp.eq.s32.totalorder %v372, %v409
  %vm415 = vcmp.eq.s32.totalorder %v375, %v409
  %vm416 = vcmp.eq.s32.totalorder %v378, %v409
  %vm417 = vcmp.eq.s32.totalorder %v381, %v409
  %vm418 = vcmp.eq.s32.totalorder %v384, %v409
  %vm419 = vcmp.eq.s32.totalorder %v387, %v409
  %vm420 = vcmp.eq.s32.totalorder %v390, %v409
  %vm421 = vcmp.eq.s32.totalorder %v393, %v409
  %vm422 = vcmp.eq.s32.totalorder %v396, %v409
  %vm423 = vcmp.eq.s32.totalorder %v399, %v409
  %vm424 = vcmp.eq.s32.totalorder %v402, %v409
  %vm425 = vcmp.eq.s32.totalorder %v405, %v409
  %vm426 = vmand %vm410, %vm309
  %vm427 = vmand %vm411, %vm310
  %vm428 = vmand %vm412, %vm311
  %vm429 = vmand %vm413, %vm312
  %vm430 = vmand %vm414, %vm313
  %vm431 = vmand %vm415, %vm314
  %vm432 = vmand %vm416, %vm315
  %vm433 = vmand %vm417, %vm316
  %vm434 = vmand %vm418, %vm317
  %vm435 = vmand %vm419, %vm318
  %vm436 = vmand %vm420, %vm319
  %vm437 = vmand %vm421, %vm320
  %vm438 = vmand %vm422, %vm321
  %vm439 = vmand %vm423, %vm322
  %vm440 = vmand %vm424, %vm323
  %vm441 = vmand %vm425, %vm324
  %v442 = vld [vmem:[#allocation2] sm:$0xff]
  %v443 = vld [vmem:[#allocation2 + $0x8] sm:$0xff]
  %v444 = vld [vmem:[#allocation2 + $0x10] sm:$0xff]
  %v445 = vld [vmem:[#allocation2 + $0x18] sm:$0xff]
  %v446 = vld [vmem:[#allocation2 + $0x20] sm:$0xff]
  %v447 = vld [vmem:[#allocation2 + $0x28] sm:$0xff]
  %v448 = vld [vmem:[#allocation2 + $0x30] sm:$0xff]
  %v449 = vld [vmem:[#allocation2 + $0x38] sm:$0xff]
  %v450 = vld [vmem:[#allocation2 + $0x40] sm:$0xff]
  %v451 = vld [vmem:[#allocation2 + $0x48] sm:$0xff]
  %v452 = vld [vmem:[#allocation2 + $0x50] sm:$0xff]
  %v453 = vld [vmem:[#allocation2 + $0x58] sm:$0xff]
  %v454 = vld [vmem:[#allocation2 + $0x60] sm:$0xff]
  %v455 = vld [vmem:[#allocation2 + $0x68] sm:$0xff]
  %v456 = vld [vmem:[#allocation2 + $0x70] sm:$0xff]
  %v457 = vld [vmem:[#allocation2 + $0x78] sm:$0xff]
  %458 = vmax.xlane.f32.xlu0 %v325
  %v459 = vpop.xlane.xlu0 %458
  %460 = vmax.xlane.f32.xlu0 %v326
  %v461 = vpop.xlane.xlu0 %460
  %462 = vmax.xlane.f32.xlu0 %v327
  %v463 = vpop.xlane.xlu0 %462
  %464 = vmax.xlane.f32.xlu0 %v328
  %v465 = vpop.xlane.xlu0 %464
  %466 = vmax.xlane.f32.xlu0 %v329
  %v467 = vpop.xlane.xlu0 %466
  %468 = vmax.xlane.f32.xlu0 %v330
  %v469 = vpop.xlane.xlu0 %468
  %470 = vmax.xlane.f32.xlu0 %v331
  %v471 = vpop.xlane.xlu0 %470
  %472 = vmax.xlane.f32.xlu0 %v332
  %v473 = vpop.xlane.xlu0 %472
  %474 = vmax.xlane.f32.xlu0 %v333
  %v475 = vpop.xlane.xlu0 %474
  %476 = vmax.xlane.f32.xlu0 %v334
  %v477 = vpop.xlane.xlu0 %476
  %478 = vmax.xlane.f32.xlu0 %v335
  %v479 = vpop.xlane.xlu0 %478
  %480 = vmax.xlane.f32.xlu0 %v336
  %v481 = vpop.xlane.xlu0 %480
  %482 = vmax.xlane.f32.xlu0 %v337
  %v483 = vpop.xlane.xlu0 %482
  %484 = vmax.xlane.f32.xlu0 %v338
  %v485 = vpop.xlane.xlu0 %484
  %486 = vmax.xlane.f32.xlu0 %v339
  %v487 = vpop.xlane.xlu0 %486
  %488 = vmax.xlane.f32.xlu0 %v340
  %v489 = vpop.xlane.xlu0 %488
  %v490 = vmax.f32 %v442, %v459
  %v491 = vmax.f32 %v443, %v461
  %v492 = vmax.f32 %v444, %v463
  %v493 = vmax.f32 %v445, %v465
  %v494 = vmax.f32 %v446, %v467
  %v495 = vmax.f32 %v447, %v469
  %v496 = vmax.f32 %v448, %v471
  %v497 = vmax.f32 %v449, %v473
  %v498 = vmax.f32 %v450, %v475
  %v499 = vmax.f32 %v451, %v477
  %v500 = vmax.f32 %v452, %v479
  %v501 = vmax.f32 %v453, %v481
  %v502 = vmax.f32 %v454, %v483
  %v503 = vmax.f32 %v455, %v485
  %v504 = vmax.f32 %v456, %v487
  %v505 = vmax.f32 %v457, %v489
  %507 = vset.pattern.permute.xlu0 0
  %508 = vperm.xlu0 %507, %v490
  %v509 = vpop.permute.xlu0 %508
  %512 = vset.pattern.permute.xlu0 0
  %513 = vperm.xlu0 %512, %v491
  %v514 = vpop.permute.xlu0 %513
  %517 = vset.pattern.permute.xlu0 0
  %518 = vperm.xlu0 %517, %v492
  %v519 = vpop.permute.xlu0 %518
  %522 = vset.pattern.permute.xlu0 0
  %523 = vperm.xlu0 %522, %v493
  %v524 = vpop.permute.xlu0 %523
  %527 = vset.pattern.permute.xlu0 0
  %528 = vperm.xlu0 %527, %v494
  %v529 = vpop.permute.xlu0 %528
  %532 = vset.pattern.permute.xlu0 0
  %533 = vperm.xlu0 %532, %v495
  %v534 = vpop.permute.xlu0 %533
  %537 = vset.pattern.permute.xlu0 0
  %538 = vperm.xlu0 %537, %v496
  %v539 = vpop.permute.xlu0 %538
  %542 = vset.pattern.permute.xlu0 0
  %543 = vperm.xlu0 %542, %v497
  %v544 = vpop.permute.xlu0 %543
  %547 = vset.pattern.permute.xlu0 0
  %548 = vperm.xlu0 %547, %v498
  %v549 = vpop.permute.xlu0 %548
  %552 = vset.pattern.permute.xlu0 0
  %553 = vperm.xlu0 %552, %v499
  %v554 = vpop.permute.xlu0 %553
  %557 = vset.pattern.permute.xlu0 0
  %558 = vperm.xlu0 %557, %v500
  %v559 = vpop.permute.xlu0 %558
  %562 = vset.pattern.permute.xlu0 0
  %563 = vperm.xlu0 %562, %v501
  %v564 = vpop.permute.xlu0 %563
  %567 = vset.pattern.permute.xlu0 0
  %568 = vperm.xlu0 %567, %v502
  %v569 = vpop.permute.xlu0 %568
  %572 = vset.pattern.permute.xlu0 0
  %573 = vperm.xlu0 %572, %v503
  %v574 = vpop.permute.xlu0 %573
  %577 = vset.pattern.permute.xlu0 0
  %578 = vperm.xlu0 %577, %v504
  %v579 = vpop.permute.xlu0 %578
  %582 = vset.pattern.permute.xlu0 0
  %583 = vperm.xlu0 %582, %v505
  %v584 = vpop.permute.xlu0 %583
  %v586 = vsub.f32 %v172, %v509
  %v587 = vsub.f32 %v177, %v514
  %v588 = vsub.f32 %v182, %v519
  %v589 = vsub.f32 %v187, %v524
  %v590 = vsub.f32 %v192, %v529
  %v591 = vsub.f32 %v197, %v534
  %v592 = vsub.f32 %v202, %v539
  %v593 = vsub.f32 %v207, %v544
  %v594 = vsub.f32 %v212, %v549
  %v595 = vsub.f32 %v217, %v554
  %v596 = vsub.f32 %v222, %v559
  %v597 = vsub.f32 %v227, %v564
  %v598 = vsub.f32 %v232, %v569
  %v599 = vsub.f32 %v237, %v574
  %v600 = vsub.f32 %v242, %v579
  %v601 = vsub.f32 %v247, %v584
  %v602 = vmul.f32 %v586, 1.442695
  %v603 = vpow.pop %v602
  %v604 = vmul.f32 %v587, 1.442695
  %v605 = vpow.pop %v604
  %v606 = vmul.f32 %v588, 1.442695
  %v607 = vpow.pop %v606
  %v608 = vmul.f32 %v589, 1.442695
  %v609 = vpow.pop %v608
  %v610 = vmul.f32 %v590, 1.442695
  %v611 = vpow.pop %v610
  %v612 = vmul.f32 %v591, 1.442695
  %v613 = vpow.pop %v612
  %v614 = vmul.f32 %v592, 1.442695
  %v615 = vpow.pop %v614
  %v616 = vmul.f32 %v593, 1.442695
  %v617 = vpow.pop %v616
  %v618 = vmul.f32 %v594, 1.442695
  %v619 = vpow.pop %v618
  %v620 = vmul.f32 %v595, 1.442695
  %v621 = vpow.pop %v620
  %v622 = vmul.f32 %v596, 1.442695
  %v623 = vpow.pop %v622
  %v624 = vmul.f32 %v597, 1.442695
  %v625 = vpow.pop %v624
  %v626 = vmul.f32 %v598, 1.442695
  %v627 = vpow.pop %v626
  %v628 = vmul.f32 %v599, 1.442695
  %v629 = vpow.pop %v628
  %v630 = vmul.f32 %v600, 1.442695
  %v631 = vpow.pop %v630
  %v632 = vmul.f32 %v601, 1.442695
  %v633 = vpow.pop %v632
  %v634 = vsel %vm309, %v603, 0.0
  %v635 = vsel %vm310, %v605, 0.0
  %v636 = vsel %vm311, %v607, 0.0
  %v637 = vsel %vm312, %v609, 0.0
  %v638 = vsel %vm313, %v611, 0.0
  %v639 = vsel %vm314, %v613, 0.0
  %v640 = vsel %vm315, %v615, 0.0
  %v641 = vsel %vm316, %v617, 0.0
  %v642 = vsel %vm317, %v619, 0.0
  %v643 = vsel %vm318, %v621, 0.0
  %v644 = vsel %vm319, %v623, 0.0
  %v645 = vsel %vm320, %v625, 0.0
  %v646 = vsel %vm321, %v627, 0.0
  %v647 = vsel %vm322, %v629, 0.0
  %v648 = vsel %vm323, %v631, 0.0
  %v649 = vsel %vm324, %v633, 0.0
  %v650 = vsub.f32 %v442, %v490
  %v651 = vsub.f32 %v443, %v491
  %v652 = vsub.f32 %v444, %v492
  %v653 = vsub.f32 %v445, %v493
  %v654 = vsub.f32 %v446, %v494
  %v655 = vsub.f32 %v447, %v495
  %v656 = vsub.f32 %v448, %v496
  %v657 = vsub.f32 %v449, %v497
  %v658 = vsub.f32 %v450, %v498
  %v659 = vsub.f32 %v451, %v499
  %v660 = vsub.f32 %v452, %v500
  %v661 = vsub.f32 %v453, %v501
  %v662 = vsub.f32 %v454, %v502
  %v663 = vsub.f32 %v455, %v503
  %v664 = vsub.f32 %v456, %v504
  %v665 = vsub.f32 %v457, %v505
  %v666 = vmul.f32 %v650, 1.442695
  %v667 = vpow.pop %v666
  %v668 = vmul.f32 %v651, 1.442695
  %v669 = vpow.pop %v668
  %v670 = vmul.f32 %v652, 1.442695
  %v671 = vpow.pop %v670
  %v672 = vmul.f32 %v653, 1.442695
  %v673 = vpow.pop %v672
  %v674 = vmul.f32 %v654, 1.442695
  %v675 = vpow.pop %v674
  %v676 = vmul.f32 %v655, 1.442695
  %v677 = vpow.pop %v676
  %v678 = vmul.f32 %v656, 1.442695
  %v679 = vpow.pop %v678
  %v680 = vmul.f32 %v657, 1.442695
  %v681 = vpow.pop %v680
  %v682 = vmul.f32 %v658, 1.442695
  %v683 = vpow.pop %v682
  %v684 = vmul.f32 %v659, 1.442695
  %v685 = vpow.pop %v684
  %v686 = vmul.f32 %v660, 1.442695
  %v687 = vpow.pop %v686
  %v688 = vmul.f32 %v661, 1.442695
  %v689 = vpow.pop %v688
  %v690 = vmul.f32 %v662, 1.442695
  %v691 = vpow.pop %v690
  %v692 = vmul.f32 %v663, 1.442695
  %v693 = vpow.pop %v692
  %v694 = vmul.f32 %v664, 1.442695
  %v695 = vpow.pop %v694
  %v696 = vmul.f32 %v665, 1.442695
  %v697 = vpow.pop %v696
  %v698 = vld [vmem:[#allocation3] sm:$0xff]
  %v699 = vld [vmem:[#allocation3 + $0x8] sm:$0xff]
  %v700 = vld [vmem:[#allocation3 + $0x10] sm:$0xff]
  %v701 = vld [vmem:[#allocation3 + $0x18] sm:$0xff]
  %v702 = vld [vmem:[#allocation3 + $0x20] sm:$0xff]
  %v703 = vld [vmem:[#allocation3 + $0x28] sm:$0xff]
  %v704 = vld [vmem:[#allocation3 + $0x30] sm:$0xff]
  %v705 = vld [vmem:[#allocation3 + $0x38] sm:$0xff]
  %v706 = vld [vmem:[#allocation3 + $0x40] sm:$0xff]
  %v707 = vld [vmem:[#allocation3 + $0x48] sm:$0xff]
  %v708 = vld [vmem:[#allocation3 + $0x50] sm:$0xff]
  %v709 = vld [vmem:[#allocation3 + $0x58] sm:$0xff]
  %v710 = vld [vmem:[#allocation3 + $0x60] sm:$0xff]
  %v711 = vld [vmem:[#allocation3 + $0x68] sm:$0xff]
  %v712 = vld [vmem:[#allocation3 + $0x70] sm:$0xff]
  %v713 = vld [vmem:[#allocation3 + $0x78] sm:$0xff]
  %v714 = vmul.f32 %v667, %v698
  %v715 = vmul.f32 %v669, %v699
  %v716 = vmul.f32 %v671, %v700
  %v717 = vmul.f32 %v673, %v701
  %v718 = vmul.f32 %v675, %v702
  %v719 = vmul.f32 %v677, %v703
  %v720 = vmul.f32 %v679, %v704
  %v721 = vmul.f32 %v681, %v705
  %v722 = vmul.f32 %v683, %v706
  %v723 = vmul.f32 %v685, %v707
  %v724 = vmul.f32 %v687, %v708
  %v725 = vmul.f32 %v689, %v709
  %v726 = vmul.f32 %v691, %v710
  %v727 = vmul.f32 %v693, %v711
  %v728 = vmul.f32 %v695, %v712
  %v729 = vmul.f32 %v697, %v713
  %730 = vadd.xlane.f32.xlu0 %v634
  %v731 = vpop.xlane.xlu0 %730
  %732 = vadd.xlane.f32.xlu0 %v635
  %v733 = vpop.xlane.xlu0 %732
  %734 = vadd.xlane.f32.xlu0 %v636
  %v735 = vpop.xlane.xlu0 %734
  %736 = vadd.xlane.f32.xlu0 %v637
  %v737 = vpop.xlane.xlu0 %736
  %738 = vadd.xlane.f32.xlu0 %v638
  %v739 = vpop.xlane.xlu0 %738
  %740 = vadd.xlane.f32.xlu0 %v639
  %v741 = vpop.xlane.xlu0 %740
  %742 = vadd.xlane.f32.xlu0 %v640
  %v743 = vpop.xlane.xlu0 %742
  %744 = vadd.xlane.f32.xlu0 %v641
  %v745 = vpop.xlane.xlu0 %744
  %746 = vadd.xlane.f32.xlu0 %v642
  %v747 = vpop.xlane.xlu0 %746
  %748 = vadd.xlane.f32.xlu0 %v643
  %v749 = vpop.xlane.xlu0 %748
  %750 = vadd.xlane.f32.xlu0 %v644
  %v751 = vpop.xlane.xlu0 %750
  %752 = vadd.xlane.f32.xlu0 %v645
  %v753 = vpop.xlane.xlu0 %752
  %754 = vadd.xlane.f32.xlu0 %v646
  %v755 = vpop.xlane.xlu0 %754
  %756 = vadd.xlane.f32.xlu0 %v647
  %v757 = vpop.xlane.xlu0 %756
  %758 = vadd.xlane.f32.xlu0 %v648
  %v759 = vpop.xlane.xlu0 %758
  %760 = vadd.xlane.f32.xlu0 %v649
  %v761 = vpop.xlane.xlu0 %760
  %v762 = vadd.f32 %v714, %v731
  %v763 = vadd.f32 %v715, %v733
  %v764 = vadd.f32 %v716, %v735
  %v765 = vadd.f32 %v717, %v737
  %v766 = vadd.f32 %v718, %v739
  %v767 = vadd.f32 %v719, %v741
  %v768 = vadd.f32 %v720, %v743
  %v769 = vadd.f32 %v721, %v745
  %v770 = vadd.f32 %v722, %v747
  %v771 = vadd.f32 %v723, %v749
  %v772 = vadd.f32 %v724, %v751
  %v773 = vadd.f32 %v725, %v753
  %v774 = vadd.f32 %v726, %v755
  %v775 = vadd.f32 %v727, %v757
  %v776 = vadd.f32 %v728, %v759
  %v777 = vadd.f32 %v729, %v761
  %vm778 = vcmask 7168
  %779 = vst.msk [vmem:[#allocation3] sm:$0xff] %vm778, %v762
  %780 = vst.msk [vmem:[#allocation3 + $0x8] sm:$0xff] %vm778, %v763
  %781 = vst.msk [vmem:[#allocation3 + $0x10] sm:$0xff] %vm778, %v764
  %782 = vst.msk [vmem:[#allocation3 + $0x18] sm:$0xff] %vm778, %v765
  %783 = vst.msk [vmem:[#allocation3 + $0x20] sm:$0xff] %vm778, %v766
  %784 = vst.msk [vmem:[#allocation3 + $0x28] sm:$0xff] %vm778, %v767
  %785 = vst.msk [vmem:[#allocation3 + $0x30] sm:$0xff] %vm778, %v768
  %786 = vst.msk [vmem:[#allocation3 + $0x38] sm:$0xff] %vm778, %v769
  %787 = vst.msk [vmem:[#allocation3 + $0x40] sm:$0xff] %vm778, %v770
  %788 = vst.msk [vmem:[#allocation3 + $0x48] sm:$0xff] %vm778, %v771
  %789 = vst.msk [vmem:[#allocation3 + $0x50] sm:$0xff] %vm778, %v772
  %790 = vst.msk [vmem:[#allocation3 + $0x58] sm:$0xff] %vm778, %v773
  %791 = vst.msk [vmem:[#allocation3 + $0x60] sm:$0xff] %vm778, %v774
  %792 = vst.msk [vmem:[#allocation3 + $0x68] sm:$0xff] %vm778, %v775
  %793 = vst.msk [vmem:[#allocation3 + $0x70] sm:$0xff] %vm778, %v776
  %794 = vst.msk [vmem:[#allocation3 + $0x78] sm:$0xff] %vm778, %v777
  %v795 = vld [vmem:[#allocation4] sm:$0xff]
  %v796 = vld [vmem:[#allocation4 + $0x8] sm:$0xff]
  %v797 = vld [vmem:[#allocation4 + $0x10] sm:$0xff]
  %v798 = vld [vmem:[#allocation4 + $0x18] sm:$0xff]
  %v799 = vld [vmem:[#allocation4 + $0x20] sm:$0xff]
  %v800 = vld [vmem:[#allocation4 + $0x28] sm:$0xff]
  %v801 = vld [vmem:[#allocation4 + $0x30] sm:$0xff]
  %v802 = vld [vmem:[#allocation4 + $0x38] sm:$0xff]
  %v803 = vld [vmem:[#allocation4 + $0x40] sm:$0xff]
  %v804 = vld [vmem:[#allocation4 + $0x48] sm:$0xff]
  %v805 = vld [vmem:[#allocation4 + $0x50] sm:$0xff]
  %v806 = vld [vmem:[#allocation4 + $0x58] sm:$0xff]
  %v807 = vld [vmem:[#allocation4 + $0x60] sm:$0xff]
  %v808 = vld [vmem:[#allocation4 + $0x68] sm:$0xff]
  %v809 = vld [vmem:[#allocation4 + $0x70] sm:$0xff]
  %v810 = vld [vmem:[#allocation4 + $0x78] sm:$0xff]
  %v811 = vsel %vm426, %v172, 0.0
  %v812 = vsel %vm427, %v177, 0.0
  %v813 = vsel %vm428, %v182, 0.0
  %v814 = vsel %vm429, %v187, 0.0
  %v815 = vsel %vm430, %v192, 0.0
  %v816 = vsel %vm431, %v197, 0.0
  %v817 = vsel %vm432, %v202, 0.0
  %v818 = vsel %vm433, %v207, 0.0
  %v819 = vsel %vm434, %v212, 0.0
  %v820 = vsel %vm435, %v217, 0.0
  %v821 = vsel %vm436, %v222, 0.0
  %v822 = vsel %vm437, %v227, 0.0
  %v823 = vsel %vm438, %v232, 0.0
  %v824 = vsel %vm439, %v237, 0.0
  %v825 = vsel %vm440, %v242, 0.0
  %v826 = vsel %vm441, %v247, 0.0
  %827 = vadd.xlane.f32.xlu0 %v811
  %v828 = vpop.xlane.xlu0 %827
  %829 = vadd.xlane.f32.xlu0 %v812
  %v830 = vpop.xlane.xlu0 %829
  %831 = vadd.xlane.f32.xlu0 %v813
  %v832 = vpop.xlane.xlu0 %831
  %833 = vadd.xlane.f32.xlu0 %v814
  %v834 = vpop.xlane.xlu0 %833
  %835 = vadd.xlane.f32.xlu0 %v815
  %v836 = vpop.xlane.xlu0 %835
  %837 = vadd.xlane.f32.xlu0 %v816
  %v838 = vpop.xlane.xlu0 %837
  %839 = vadd.xlane.f32.xlu0 %v817
  %v840 = vpop.xlane.xlu0 %839
  %841 = vadd.xlane.f32.xlu0 %v818
  %v842 = vpop.xlane.xlu0 %841
  %843 = vadd.xlane.f32.xlu0 %v819
  %v844 = vpop.xlane.xlu0 %843
  %845 = vadd.xlane.f32.xlu0 %v820
  %v846 = vpop.xlane.xlu0 %845
  %847 = vadd.xlane.f32.xlu0 %v821
  %v848 = vpop.xlane.xlu0 %847
  %849 = vadd.xlane.f32.xlu0 %v822
  %v850 = vpop.xlane.xlu0 %849
  %851 = vadd.xlane.f32.xlu0 %v823
  %v852 = vpop.xlane.xlu0 %851
  %853 = vadd.xlane.f32.xlu0 %v824
  %v854 = vpop.xlane.xlu0 %853
  %855 = vadd.xlane.f32.xlu0 %v825
  %v856 = vpop.xlane.xlu0 %855
  %857 = vadd.xlane.f32.xlu0 %v826
  %v858 = vpop.xlane.xlu0 %857
  %v859 = vadd.f32 %v795, %v828
  %v860 = vadd.f32 %v796, %v830
  %v861 = vadd.f32 %v797, %v832
  %v862 = vadd.f32 %v798, %v834
  %v863 = vadd.f32 %v799, %v836
  %v864 = vadd.f32 %v800, %v838
  %v865 = vadd.f32 %v801, %v840
  %v866 = vadd.f32 %v802, %v842
  %v867 = vadd.f32 %v803, %v844
  %v868 = vadd.f32 %v804, %v846
  %v869 = vadd.f32 %v805, %v848
  %v870 = vadd.f32 %v806, %v850
  %v871 = vadd.f32 %v807, %v852
  %v872 = vadd.f32 %v808, %v854
  %v873 = vadd.f32 %v809, %v856
  %v874 = vadd.f32 %v810, %v858
  %875 = vst.msk [vmem:[#allocation4] sm:$0xff] %vm778, %v859
  %876 = vst.msk [vmem:[#allocation4 + $0x8] sm:$0xff] %vm778, %v860
  %877 = vst.msk [vmem:[#allocation4 + $0x10] sm:$0xff] %vm778, %v861
  %878 = vst.msk [vmem:[#allocation4 + $0x18] sm:$0xff] %vm778, %v862
  %879 = vst.msk [vmem:[#allocation4 + $0x20] sm:$0xff] %vm778, %v863
  %880 = vst.msk [vmem:[#allocation4 + $0x28] sm:$0xff] %vm778, %v864
  %881 = vst.msk [vmem:[#allocation4 + $0x30] sm:$0xff] %vm778, %v865
  %882 = vst.msk [vmem:[#allocation4 + $0x38] sm:$0xff] %vm778, %v866
  %883 = vst.msk [vmem:[#allocation4 + $0x40] sm:$0xff] %vm778, %v867
  %884 = vst.msk [vmem:[#allocation4 + $0x48] sm:$0xff] %vm778, %v868
  %885 = vst.msk [vmem:[#allocation4 + $0x50] sm:$0xff] %vm778, %v869
  %886 = vst.msk [vmem:[#allocation4 + $0x58] sm:$0xff] %vm778, %v870
  %887 = vst.msk [vmem:[#allocation4 + $0x60] sm:$0xff] %vm778, %v871
  %888 = vst.msk [vmem:[#allocation4 + $0x68] sm:$0xff] %vm778, %v872
  %889 = vst.msk [vmem:[#allocation4 + $0x70] sm:$0xff] %vm778, %v873
  %890 = vst.msk [vmem:[#allocation4 + $0x78] sm:$0xff] %vm778, %v874
  %891 = vst.msk [vmem:[#allocation2] sm:$0xff] %vm778, %v490
  %892 = vst.msk [vmem:[#allocation2 + $0x8] sm:$0xff] %vm778, %v491
  %893 = vst.msk [vmem:[#allocation2 + $0x10] sm:$0xff] %vm778, %v492
  %894 = vst.msk [vmem:[#allocation2 + $0x18] sm:$0xff] %vm778, %v493
  %895 = vst.msk [vmem:[#allocation2 + $0x20] sm:$0xff] %vm778, %v494
  %896 = vst.msk [vmem:[#allocation2 + $0x28] sm:$0xff] %vm778, %v495
  %897 = vst.msk [vmem:[#allocation2 + $0x30] sm:$0xff] %vm778, %v496
  %898 = vst.msk [vmem:[#allocation2 + $0x38] sm:$0xff] %vm778, %v497
  %899 = vst.msk [vmem:[#allocation2 + $0x40] sm:$0xff] %vm778, %v498
  %900 = vst.msk [vmem:[#allocation2 + $0x48] sm:$0xff] %vm778, %v499
  %901 = vst.msk [vmem:[#allocation2 + $0x50] sm:$0xff] %vm778, %v500
  %902 = vst.msk [vmem:[#allocation2 + $0x58] sm:$0xff] %vm778, %v501
  %903 = vst.msk [vmem:[#allocation2 + $0x60] sm:$0xff] %vm778, %v502
  %904 = vst.msk [vmem:[#allocation2 + $0x68] sm:$0xff] %vm778, %v503
  %905 = vst.msk [vmem:[#allocation2 + $0x70] sm:$0xff] %vm778, %v504
  %906 = vst.msk [vmem:[#allocation2 + $0x78] sm:$0xff] %vm778, %v505
  // Predicated region
  $region26: #{tpu_custom_call.1} parent=0 // pred_check
    %p907 = pneg %p20
  $region27: #{tpu_custom_call.1} parent=0 // pred_check_branch
    %909 = sbr.rel (%p907) target = $region29
  $region28: #{tpu_custom_call.1} parent=0 // pred_region
    %v910 = vld [vmem:[#allocation4] sm:$0xff]
    %v911 = vld [vmem:[#allocation4 + $0x8] sm:$0xff]
    %v912 = vld [vmem:[#allocation4 + $0x10] sm:$0xff]
    %v913 = vld [vmem:[#allocation4 + $0x18] sm:$0xff]
    %v914 = vld [vmem:[#allocation4 + $0x20] sm:$0xff]
    %v915 = vld [vmem:[#allocation4 + $0x28] sm:$0xff]
    %v916 = vld [vmem:[#allocation4 + $0x30] sm:$0xff]
    %v917 = vld [vmem:[#allocation4 + $0x38] sm:$0xff]
    %v918 = vld [vmem:[#allocation4 + $0x40] sm:$0xff]
    %v919 = vld [vmem:[#allocation4 + $0x48] sm:$0xff]
    %v920 = vld [vmem:[#allocation4 + $0x50] sm:$0xff]
    %v921 = vld [vmem:[#allocation4 + $0x58] sm:$0xff]
    %v922 = vld [vmem:[#allocation4 + $0x60] sm:$0xff]
    %v923 = vld [vmem:[#allocation4 + $0x68] sm:$0xff]
    %v924 = vld [vmem:[#allocation4 + $0x70] sm:$0xff]
    %v925 = vld [vmem:[#allocation4 + $0x78] sm:$0xff]
    %v926 = vld [vmem:[%s4] sm:$0xff]
    %v927 = vld [vmem:[%s4 + $0x8] sm:$0xff]
    %v928 = vld [vmem:[%s4 + $0x10] sm:$0xff]
    %v929 = vld [vmem:[%s4 + $0x18] sm:$0xff]
    %v930 = vld [vmem:[%s4 + $0x20] sm:$0xff]
    %v931 = vld [vmem:[%s4 + $0x28] sm:$0xff]
    %v932 = vld [vmem:[%s4 + $0x30] sm:$0xff]
    %v933 = vld [vmem:[%s4 + $0x38] sm:$0xff]
    %v934 = vld [vmem:[%s4 + $0x40] sm:$0xff]
    %v935 = vld [vmem:[%s4 + $0x48] sm:$0xff]
    %v936 = vld [vmem:[%s4 + $0x50] sm:$0xff]
    %v937 = vld [vmem:[%s4 + $0x58] sm:$0xff]
    %v938 = vld [vmem:[%s4 + $0x60] sm:$0xff]
    %v939 = vld [vmem:[%s4 + $0x68] sm:$0xff]
    %v940 = vld [vmem:[%s4 + $0x70] sm:$0xff]
    %v941 = vld [vmem:[%s4 + $0x78] sm:$0xff]
    %v942 = vmul.f32 %v910, %v926
    %v943 = vmul.f32 %v911, %v927
    %v944 = vmul.f32 %v912, %v928
    %v945 = vmul.f32 %v913, %v929
    %v946 = vmul.f32 %v914, %v930
    %v947 = vmul.f32 %v915, %v931
    %v948 = vmul.f32 %v916, %v932
    %v949 = vmul.f32 %v917, %v933
    %v950 = vmul.f32 %v918, %v934
    %v951 = vmul.f32 %v919, %v935
    %v952 = vmul.f32 %v920, %v936
    %v953 = vmul.f32 %v921, %v937
    %v954 = vmul.f32 %v922, %v938
    %v955 = vmul.f32 %v923, %v939
    %v956 = vmul.f32 %v924, %v940
    %v957 = vmul.f32 %v925, %v941
    %v958 = vld [vmem:[#allocation2] sm:$0xff]
    %v959 = vld [vmem:[#allocation2 + $0x8] sm:$0xff]
    %v960 = vld [vmem:[#allocation2 + $0x10] sm:$0xff]
    %v961 = vld [vmem:[#allocation2 + $0x18] sm:$0xff]
    %v962 = vld [vmem:[#allocation2 + $0x20] sm:$0xff]
    %v963 = vld [vmem:[#allocation2 + $0x28] sm:$0xff]
    %v964 = vld [vmem:[#allocation2 + $0x30] sm:$0xff]
    %v965 = vld [vmem:[#allocation2 + $0x38] sm:$0xff]
    %v966 = vld [vmem:[#allocation2 + $0x40] sm:$0xff]
    %v967 = vld [vmem:[#allocation2 + $0x48] sm:$0xff]
    %v968 = vld [vmem:[#allocation2 + $0x50] sm:$0xff]
    %v969 = vld [vmem:[#allocation2 + $0x58] sm:$0xff]
    %v970 = vld [vmem:[#allocation2 + $0x60] sm:$0xff]
    %v971 = vld [vmem:[#allocation2 + $0x68] sm:$0xff]
    %v972 = vld [vmem:[#allocation2 + $0x70] sm:$0xff]
    %v973 = vld [vmem:[#allocation2 + $0x78] sm:$0xff]
    %v974 = vsub.f32 %v942, %v958
    %v975 = vsub.f32 %v943, %v959
    %v976 = vsub.f32 %v944, %v960
    %v977 = vsub.f32 %v945, %v961
    %v978 = vsub.f32 %v946, %v962
    %v979 = vsub.f32 %v947, %v963
    %v980 = vsub.f32 %v948, %v964
    %v981 = vsub.f32 %v949, %v965
    %v982 = vsub.f32 %v950, %v966
    %v983 = vsub.f32 %v951, %v967
    %v984 = vsub.f32 %v952, %v968
    %v985 = vsub.f32 %v953, %v969
    %v986 = vsub.f32 %v954, %v970
    %v987 = vsub.f32 %v955, %v971
    %v988 = vsub.f32 %v956, %v972
    %v989 = vsub.f32 %v957, %v973
    %v990 = vld [vmem:[#allocation3] sm:$0xff]
    %v991 = vld [vmem:[#allocation3 + $0x8] sm:$0xff]
    %v992 = vld [vmem:[#allocation3 + $0x10] sm:$0xff]
    %v993 = vld [vmem:[#allocation3 + $0x18] sm:$0xff]
    %v994 = vld [vmem:[#allocation3 + $0x20] sm:$0xff]
    %v995 = vld [vmem:[#allocation3 + $0x28] sm:$0xff]
    %v996 = vld [vmem:[#allocation3 + $0x30] sm:$0xff]
    %v997 = vld [vmem:[#allocation3 + $0x38] sm:$0xff]
    %v998 = vld [vmem:[#allocation3 + $0x40] sm:$0xff]
    %v999 = vld [vmem:[#allocation3 + $0x48] sm:$0xff]
    %v1000 = vld [vmem:[#allocation3 + $0x50] sm:$0xff]
    %v1001 = vld [vmem:[#allocation3 + $0x58] sm:$0xff]
    %v1002 = vld [vmem:[#allocation3 + $0x60] sm:$0xff]
    %v1003 = vld [vmem:[#allocation3 + $0x68] sm:$0xff]
    %v1004 = vld [vmem:[#allocation3 + $0x70] sm:$0xff]
    %v1005 = vld [vmem:[#allocation3 + $0x78] sm:$0xff]
    %v1006 = vlog2.pop %v990
    %v1007 = vmul.f32 %v1006, 0.6931472
    %v1008 = vlog2.pop %v991
    %v1009 = vmul.f32 %v1008, 0.6931472
    %v1010 = vlog2.pop %v992
    %v1011 = vmul.f32 %v1010, 0.6931472
    %v1012 = vlog2.pop %v993
    %v1013 = vmul.f32 %v1012, 0.6931472
    %v1014 = vlog2.pop %v994
    %v1015 = vmul.f32 %v1014, 0.6931472
    %v1016 = vlog2.pop %v995
    %v1017 = vmul.f32 %v1016, 0.6931472
    %v1018 = vlog2.pop %v996
    %v1019 = vmul.f32 %v1018, 0.6931472
    %v1020 = vlog2.pop %v997
    %v1021 = vmul.f32 %v1020, 0.6931472
    %v1022 = vlog2.pop %v998
    %v1023 = vmul.f32 %v1022, 0.6931472
    %v1024 = vlog2.pop %v999
    %v1025 = vmul.f32 %v1024, 0.6931472
    %v1026 = vlog2.pop %v1000
    %v1027 = vmul.f32 %v1026, 0.6931472
    %v1028 = vlog2.pop %v1001
    %v1029 = vmul.f32 %v1028, 0.6931472
    %v1030 = vlog2.pop %v1002
    %v1031 = vmul.f32 %v1030, 0.6931472
    %v1032 = vlog2.pop %v1003
    %v1033 = vmul.f32 %v1032, 0.6931472
    %v1034 = vlog2.pop %v1004
    %v1035 = vmul.f32 %v1034, 0.6931472
    %v1036 = vlog2.pop %v1005
    %v1037 = vmul.f32 %v1036, 0.6931472
    %v1038 = vsub.f32 %v974, %v1007
    %v1039 = vsub.f32 %v975, %v1009
    %v1040 = vsub.f32 %v976, %v1011
    %v1041 = vsub.f32 %v977, %v1013
    %v1042 = vsub.f32 %v978, %v1015
    %v1043 = vsub.f32 %v979, %v1017
    %v1044 = vsub.f32 %v980, %v1019
    %v1045 = vsub.f32 %v981, %v1021
    %v1046 = vsub.f32 %v982, %v1023
    %v1047 = vsub.f32 %v983, %v1025
    %v1048 = vsub.f32 %v984, %v1027
    %v1049 = vsub.f32 %v985, %v1029
    %v1050 = vsub.f32 %v986, %v1031
    %v1051 = vsub.f32 %v987, %v1033
    %v1052 = vsub.f32 %v988, %v1035
    %v1053 = vsub.f32 %v989, %v1037
    %v1054 = vsub.f32 0.0, %v1038
    %v1055 = vsub.f32 0.0, %v1039
    %v1056 = vsub.f32 0.0, %v1040
    %v1057 = vsub.f32 0.0, %v1041
    %v1058 = vsub.f32 0.0, %v1042
    %v1059 = vsub.f32 0.0, %v1043
    %v1060 = vsub.f32 0.0, %v1044
    %v1061 = vsub.f32 0.0, %v1045
    %v1062 = vsub.f32 0.0, %v1046
    %v1063 = vsub.f32 0.0, %v1047
    %v1064 = vsub.f32 0.0, %v1048
    %v1065 = vsub.f32 0.0, %v1049
    %v1066 = vsub.f32 0.0, %v1050
    %v1067 = vsub.f32 0.0, %v1051
    %v1068 = vsub.f32 0.0, %v1052
    %v1069 = vsub.f32 0.0, %v1053
    %1070 = vst.msk [vmem:[%s5] sm:$0xff] %vm778, %v1054
    %1071 = vst.msk [vmem:[%s5 + $0x8] sm:$0xff] %vm778, %v1055
    %1072 = vst.msk [vmem:[%s5 + $0x10] sm:$0xff] %vm778, %v1056
    %1073 = vst.msk [vmem:[%s5 + $0x18] sm:$0xff] %vm778, %v1057
    %1074 = vst.msk [vmem:[%s5 + $0x20] sm:$0xff] %vm778, %v1058
    %1075 = vst.msk [vmem:[%s5 + $0x28] sm:$0xff] %vm778, %v1059
    %1076 = vst.msk [vmem:[%s5 + $0x30] sm:$0xff] %vm778, %v1060
    %1077 = vst.msk [vmem:[%s5 + $0x38] sm:$0xff] %vm778, %v1061
    %1078 = vst.msk [vmem:[%s5 + $0x40] sm:$0xff] %vm778, %v1062
    %1079 = vst.msk [vmem:[%s5 + $0x48] sm:$0xff] %vm778, %v1063
    %1080 = vst.msk [vmem:[%s5 + $0x50] sm:$0xff] %vm778, %v1064
    %1081 = vst.msk [vmem:[%s5 + $0x58] sm:$0xff] %vm778, %v1065
    %1082 = vst.msk [vmem:[%s5 + $0x60] sm:$0xff] %vm778, %v1066
    %1083 = vst.msk [vmem:[%s5 + $0x68] sm:$0xff] %vm778, %v1067
    %1084 = vst.msk [vmem:[%s5 + $0x70] sm:$0xff] %vm778, %v1068
    %1085 = vst.msk [vmem:[%s5 + $0x78] sm:$0xff] %vm778, %v1069
  $region29: #{tpu_custom_call.1} parent=0 // pred_fallthru
    _
  // Predicated region
  $region30: #{tpu_custom_call.1} parent=0 // pred_check
    _
  $region31: #{tpu_custom_call.1} parent=0 // pred_check_branch
    %1087 = sbr.rel (0) target = $region33
  $region32: #{tpu_custom_call.1} parent=0 // pred_region
    _
  $region33: #{tpu_custom_call.1} parent=0 // pred_fallthru
    _
  // Predicated region
  $region34: #{tpu_custom_call.1} parent=0 // pred_check
    _
  $region35: #{tpu_custom_call.1} parent=0 // pred_check_branch
    %1089 = sbr.rel (0) target = $region37
  $region36: #{tpu_custom_call.1} parent=0 // pred_region
    _
  $region37: #{tpu_custom_call.1} parent=0 // pred_fallthru
    _

</llo_original>
